<compile_context>
chip_gen: v7x
topology: tpu7x:2x2x1
jax: 0.10.0
libtpu: 0.0.40
codegen_flags: <defaults>
</compile_context>

<pallas_src>
import jax
import jax.numpy as jnp
from jax.experimental import pallas as pl
from jax.experimental.pallas import tpu as pltpu


def _round_up(x, m):
    return (x + m - 1) // m * m


def _vmem_budget_bytes():
    """Per-generation VMEM budget: ~75% of physical capacity, capped at 112 MiB.

    v7x (64 MiB physical) -> ~48 MiB; v5e/v6e (128 MiB) -> ~96 MiB; conservative 48 MiB
    fallback if the hardware query is unavailable."""
    cap = None
    try:
        info = pltpu.get_tpu_info()
        cap = getattr(info, "vmem_capacity_bytes", None)
    except Exception:
        cap = None
    if not cap:
        cap = 64 * 1024 * 1024
    return int(min(cap * 3 // 4, 112 * 1024 * 1024))


def _choose_batch_tile(B, per_b_bytes, act_budget):
    """Largest divisor of B whose double-buffered per-step blocks fit `act_budget`.

    Prefers a grid of length >= 2 so v7x's two TensorCores both get work; on 1-TC
    v5e/v6e the single extra grid step costs only ~0.35 us."""
    divisors = [d for d in range(1, B + 1) if B % d == 0]
    fits = [d for d in divisors if 2 * d * per_b_bytes <= act_budget]
    if not fits:
        return 1
    multi = [d for d in fits if B // d >= 2]
    return max(multi) if multi else max(fits)


def pointer_kernel(static_ref, dynamic_ref, b1_ref, ws_ref, wd_ref, v_ref, out_ref):
    """Processes `tb` batch elements per grid step.

    static_ref : (tb, H, S)  static features       (f32 or bf16)
    dynamic_ref: (tb, H, S)  dynamic features      (f32 or bf16)
    b1_ref     : (B,  H, 1)  resident w1c @ decoder_hidden[b]  (f32)
    ws_ref     : (3H, H)     resident [w1a; w2a; w2b]          (f32 or bf16)
    wd_ref     : (2H, H)     resident [w1b; w2c]               (f32 or bf16)
    v_ref      : (H, 2)      resident columns [v1 | v2]        (f32)
    out_ref    : (tb, 1, S)  attention scores                  (f32)
    """
    tb = static_ref.shape[0]
    h = v_ref.shape[0]

    ws = ws_ref[...]                     # (3H, H) -- tiny, resident
    wd = wd_ref[...]                     # (2H, H)
    v = v_ref[...]                       # (H, 2)
    v1 = v[:, 0:1]                       # (H, 1)
    v2 = v[:, 1:2]                       # (H, 1)
    base = pl.program_id(0) * tb         # global batch offset of this tile

    def body(b, carry):
        st = static_ref[b]                                                 # (H, S)
        dy = dynamic_ref[b]                                                # (H, S)

        # Two MXU pushes per batch element (K = H, M = 3H / 2H, N = S), f32 accumulate.
        # TODO(synk): for compute-bound large-H configs on v6e/v7x, fuse to one push with
        # N = tb*S by presenting a (H, tb*S) activation slab (needs an upstream relayout).
        pre_s = jnp.dot(ws, st, preferred_element_type=jnp.float32)        # (3H, S)
        pre_d = jnp.dot(wd, dy, preferred_element_type=jnp.float32)        # (2H, S)

        b1 = b1_ref[base + b]                                              # (H, 1) f32

        # ---- first attention (decoder-hidden GEMV hoisted to wrapper as b1) ----
        t1 = jnp.tanh(pre_s[:h] + pre_d[:h] + b1)                          # (H, S)
        a1 = jnp.sum(t1 * v1, axis=0, keepdims=True)                       # (1, S) VPU+XLU

        # softmax over seq (lane axis); EUP reciprocal for the denominator
        a1 = a1 - jnp.max(a1, axis=-1, keepdims=True)
        e = jnp.exp(a1)
        p = e * pl.reciprocal(jnp.sum(e, axis=-1, keepdims=True), approx=True)  # (1, S)

        # ---- second attention ----
        # w2b @ dytext == sum_s p[s] * (w2b @ static)[:, s] -> lane reduce of pre_s[2H:] * p
        bias2 = jnp.sum(pre_s[2 * h:] * p, axis=-1, keepdims=True)         # (H, 1)
        t2 = jnp.tanh(pre_s[h:2 * h] + pre_d[h:] + bias2)                  # (H, S)
        a2 = jnp.sum(t2 * v2, axis=0, keepdims=True)                       # (1, S)

        out_ref[b] = a2.astype(out_ref.dtype)
        return carry

    # fori_loop bounds vreg live ranges at one iteration's working set (a Python unroll
    # would keep every iteration's pre/t1/t2 live and spill for larger batch tiles).
    jax.lax.fori_loop(0, tb, body, None)


def pointer_forward(static_, dynamic_, decoder_hidden, params, *,
                    batch_tile=None, use_bf16=True):
    """static_, dynamic_: (B, H, S); decoder_hidden: (B, H). Returns (B, S).

    use_bf16=True casts only the B*2H*S activation stream (and the tiny weights) to bf16;
    MXU accumulation and all tanh/exp/softmax stay in f32.  If the inputs already arrive
    in bf16 the cast is a no-op (preferred: feed bf16 from upstream)."""
    B, H, S = static_.shape
    vv1, ww1, vv2, ww2 = params  # (1,1,H), (1,H,3H), (1,1,H), (1,H,3H)

    # TODO(synk): pad H to a multiple of 8 and S to a multiple of 128 for other sizes.
    assert H % 8 == 0 and S % 128 == 0, "kernel assumes H % 8 == 0 and S % 128 == 0"

    # ---- wrapper-side glue (parameter prep only; no pass over the big activations) ----
    w1 = ww1[0]
    w1a, w1b, w1c = w1[:, :H], w1[:, H:2 * H], w1[:, 2 * H:]
    w2 = ww2[0]
    w2a, w2b, w2c = w2[:, :H], w2[:, H:2 * H], w2[:, 2 * H:]

    compute_dtype = jnp.bfloat16 if use_bf16 else jnp.float32

    w_s = jnp.concatenate([w1a, w2a, w2b], axis=0).astype(compute_dtype)   # (3H, H) @ static
    w_d = jnp.concatenate([w1b, w2c], axis=0).astype(compute_dtype)        # (2H, H) @ dynamic
    vcols = jnp.stack([vv1[0, 0], vv2[0, 0]], axis=1).astype(jnp.float32)  # (H, 2)

    # Hoisted decoder-hidden GEMV: b1[b] = w1c @ decoder_hidden[b]  (tiny, stays f32).
    b1 = jnp.einsum('hk,bk->bh', w1c, decoder_hidden)[:, :, None]
    b1 = b1.astype(jnp.float32)                                            # (B, H, 1)

    static_c = static_.astype(compute_dtype)    # no-op if already compute_dtype
    dynamic_c = dynamic_.astype(compute_dtype)

    # ---- batch-tile / VMEM-budget selection (per-generation) ----
    itemsize = jnp.dtype(compute_dtype).itemsize
    sub = 16 if itemsize == 2 else 8
    per_b_act = 2 * _round_up(H, sub) * _round_up(S, 128) * itemsize       # static + dynamic
    per_b_out = 8 * _round_up(S, 128) * 4                                  # (1,S) block, sublane-padded
    per_b_bytes = per_b_act + per_b_out

    budget = _vmem_budget_bytes()
    resident = (B * _round_up(H, 8) * 128 * 4            # b1, last dim lane-padded to 128
                + 5 * H * _round_up(H, 128) * itemsize   # w_s + w_d
                + _round_up(H, 8) * 128 * 4              # v columns
                + (2 << 20))                             # misc headroom
    act_budget = max(budget - resident, per_b_bytes)

    if batch_tile is None:
        tb = _choose_batch_tile(B, per_b_bytes, act_budget)
    else:
        tb = max(1, min(int(batch_tile), B))
        # Keep tb a divisor of B: avoids a jnp.pad HBM pass over the dominant stream.
        # TODO(synk): a @pl.when(global_b < B) tail guard would avoid shrinking tb for prime B.
        while B % tb != 0:
            tb -= 1

    per_batch3 = lambda i: (i, 0, 0)
    whole2 = lambda i: (0, 0)
    whole3 = lambda i: (0, 0, 0)

    out = pl.pallas_call(
        pointer_kernel,
        out_shape=jax.ShapeDtypeStruct((B, 1, S), jnp.float32),
        grid_spec=pltpu.PrefetchScalarGridSpec(
            num_scalar_prefetch=0,
            grid=(B // tb,),
            in_specs=[
                pl.BlockSpec((tb, H, S), per_batch3),       # static
                pl.BlockSpec((tb, H, S), per_batch3),       # dynamic
                pl.BlockSpec((B, H, 1), whole3),            # resident decoder-hidden bias
                pl.BlockSpec((3 * H, H), whole2),           # resident weight (static side)
                pl.BlockSpec((2 * H, H), whole2),           # resident weight (dynamic side)
                pl.BlockSpec((H, 2), whole2),               # resident [v1 | v2]
            ],
            out_specs=pl.BlockSpec((tb, 1, S), per_batch3),
        ),
        compiler_params=pltpu.CompilerParams(
            dimension_semantics=("parallel",),
            vmem_limit_bytes=budget,
        ),
    )(static_c, dynamic_c, b1, w_s, w_d, vcols)

    return out[:, 0, :]  # free squeeze -> (B, S)


def pointer_reference(static_, dynamic_, decoder_hidden, params):
    """Plain-JAX replica of the PyTorch forward, for verification."""
    vv1, ww1, vv2, ww2 = params
    B, H, S = static_.shape
    hidden = jnp.broadcast_to(decoder_hidden[:, :, None], (B, H, S))
    cat_1 = jnp.concatenate((static_, dynamic_, hidden), axis=1)          # (B,3H,S)
    attn_1 = jnp.matmul(vv1, jnp.tanh(jnp.matmul(ww1, cat_1)))            # (B,1,S)
    attns_1 = jax.nn.softmax(attn_1, axis=2)
    dytext = jnp.matmul(attns_1, jnp.transpose(static_, (0, 2, 1)))       # (B,1,H)
    dytext = jnp.broadcast_to(jnp.transpose(dytext, (0, 2, 1)), (B, H, S))
    cat_2 = jnp.concatenate((static_, dytext, dynamic_), axis=1)          # (B,3H,S)
    so = jnp.matmul(vv2, jnp.tanh(jnp.matmul(ww2, cat_2)))                # (B,1,S)
    return so[:, 0, :]


if __name__ == "__main__":
    B, H, S = 8, 32, 128  # batch, hidden_size, sequence length

    key = jax.random.PRNGKey(0)
    k = jax.random.split(key, 7)
    static_ = jax.random.normal(k[0], (B, H, S), dtype=jnp.float32)
    dynamic_ = jax.random.normal(k[1], (B, H, S), dtype=jnp.float32)
    decoder_hidden = jax.random.normal(k[2], (B, H), dtype=jnp.float32)

    # Deterministic parameter init (module declares shapes but no init scheme).
    scale = 1.0 / jnp.sqrt(jnp.float32(H))
    vv1 = jax.random.normal(k[3], (1, 1, H), dtype=jnp.float32) * scale
    ww1 = jax.random.normal(k[4], (1, H, 3 * H), dtype=jnp.float32) * scale
    vv2 = jax.random.normal(k[5], (1, 1, H), dtype=jnp.float32) * scale
    ww2 = jax.random.normal(k[6], (1, H, 3 * H), dtype=jnp.float32) * scale
    params = (vv1, ww1, vv2, ww2)

    ref = pointer_reference(static_, dynamic_, decoder_hidden, params)

    # f32 path, auto batch tile (tight tolerance; approx reciprocal on softmax denom only).
    out_f32 = pointer_forward(static_, dynamic_, decoder_hidden, params, use_bf16=False)
    out_f32 = jax.block_until_ready(out_f32)
    assert out_f32.shape == (B, S)
    assert jnp.allclose(out_f32, ref, atol=5e-3, rtol=5e-3), "f32 kernel mismatch vs reference"

    # f32 path, whole batch in one grid step (exercises the single-step tiling).
    out_f32b = pointer_forward(static_, dynamic_, decoder_hidden, params,
                               batch_tile=B, use_bf16=False)
    out_f32b = jax.block_until_ready(out_f32b)
    assert jnp.allclose(out_f32b, ref, atol=5e-3, rtol=5e-3), "f32/tb=B kernel mismatch"

    # Default bf16 activation path (f32 accumulation + f32 tanh/softmax).
    out_bf16 = pointer_forward(static_, dynamic_, decoder_hidden, params)
    out_bf16 = jax.block_until_ready(out_bf16)
    assert out_bf16.shape == (B, S)
    assert jnp.allclose(out_bf16, ref, atol=1e-1, rtol=1e-1), "bf16 kernel mismatch vs reference"

    print("KERNEL_OK")
</pallas_src>

<mosaic_0001>
module attributes {stable_mosaic.version = 11 : i64} {
  func.func @pointer_kernel(%arg0: i32, %arg1: memref<4x32x128xf32, #tpu.memory_space<vmem>>, %arg2: memref<4x32x128xf32, #tpu.memory_space<vmem>>, %arg3: memref<8x32x1xf32, #tpu.memory_space<vmem>>, %arg4: memref<96x32xf32, #tpu.memory_space<vmem>>, %arg5: memref<64x32xf32, #tpu.memory_space<vmem>>, %arg6: memref<32x2xf32, #tpu.memory_space<vmem>>, %arg7: memref<4x1x128xf32, #tpu.memory_space<vmem>>) attributes {dimension_semantics = [#tpu.dimension_semantics<parallel>], iteration_bounds = array<i64: 2>, scalar_prefetch = 0 : i64, scratch_operands = 0 : i64, tpu.core_type = #tpu.core_type<tc>, window_params = [{transform_indices = @transform_0, window_bounds = array<i64: 4, 32, 128>}, {transform_indices = @transform_1, window_bounds = array<i64: 4, 32, 128>}, {pipeline_mode = #tpu.pipeline_mode<synchronous>, transform_indices = @transform_2, window_bounds = array<i64: 8, 32, 1>}, {pipeline_mode = #tpu.pipeline_mode<synchronous>, transform_indices = @transform_3, window_bounds = array<i64: 96, 32>}, {pipeline_mode = #tpu.pipeline_mode<synchronous>, transform_indices = @transform_4, window_bounds = array<i64: 64, 32>}, {pipeline_mode = #tpu.pipeline_mode<synchronous>, transform_indices = @transform_5, window_bounds = array<i64: 32, 2>}, {transform_indices = @transform_6, window_bounds = array<i64: 4, 1, 128>}]} {
    %c0 = arith.constant 0 : index
    %c0_0 = arith.constant 0 : index
    %0 = vector.load %arg4[%c0, %c0_0] : memref<96x32xf32, #tpu.memory_space<vmem>>, vector<96x32xf32>
    %c0_1 = arith.constant 0 : index
    %c0_2 = arith.constant 0 : index
    %1 = vector.load %arg5[%c0_1, %c0_2] : memref<64x32xf32, #tpu.memory_space<vmem>>, vector<64x32xf32>
    %c0_3 = arith.constant 0 : index
    %c0_4 = arith.constant 0 : index
    %2 = vector.load %arg6[%c0_3, %c0_4] : memref<32x2xf32, #tpu.memory_space<vmem>>, vector<32x2xf32>
    %3 = vector.extract_strided_slice %2 {offsets = [0, 0], sizes = [32, 1], strides = [1, 1]} : vector<32x2xf32> to vector<32x1xf32>
    %4 = vector.extract_strided_slice %2 {offsets = [0, 1], sizes = [32, 1], strides = [1, 1]} : vector<32x2xf32> to vector<32x1xf32>
    %c4_i32 = arith.constant 4 : i32
    %5 = arith.muli %arg0, %c4_i32 : i32
    %c0_i32 = arith.constant 0 : i32
    %c4_i32_5 = arith.constant 4 : i32
    %6 = arith.addi %c0_i32, %c4_i32_5 : i32
    %c1_i32 = arith.constant 1 : i32
    scf.for %arg8 = %c0_i32 to %6 step %c1_i32  : i32 {
      %7 = arith.index_cast %arg8 : i32 to index
      %c0_7 = arith.constant 0 : index
      %c0_8 = arith.constant 0 : index
      %8 = vector.load %arg1[%7, %c0_7, %c0_8] : memref<4x32x128xf32, #tpu.memory_space<vmem>>, vector<1x32x128xf32>
      %9 = vector.shape_cast %8 : vector<1x32x128xf32> to vector<32x128xf32>
      %10 = arith.index_cast %arg8 : i32 to index
      %c0_9 = arith.constant 0 : index
      %c0_10 = arith.constant 0 : index
      %11 = vector.load %arg2[%10, %c0_9, %c0_10] : memref<4x32x128xf32, #tpu.memory_space<vmem>>, vector<1x32x128xf32>
      %12 = vector.shape_cast %11 : vector<1x32x128xf32> to vector<32x128xf32>
      %cst = arith.constant dense<0.000000e+00> : vector<96x128xf32>
      %13 = tpu.matmul %0, %9, %cst {dimension_numbers = #tpu.dot_dimension_numbers<[1], [0], [0], [1], [0, 0, 1, 1], [], []>} : vector<96x32xf32>, vector<32x128xf32>, vector<96x128xf32> -> vector<96x128xf32>
      %cst_11 = arith.constant dense<0.000000e+00> : vector<64x128xf32>
      %14 = tpu.matmul %1, %12, %cst_11 {dimension_numbers = #tpu.dot_dimension_numbers<[1], [0], [0], [1], [0, 0, 1, 1], [], []>} : vector<64x32xf32>, vector<32x128xf32>, vector<64x128xf32> -> vector<64x128xf32>
      %15 = arith.addi %5, %arg8 : i32
      %16 = arith.index_cast %15 : i32 to index
      %c0_12 = arith.constant 0 : index
      %c0_13 = arith.constant 0 : index
      %17 = vector.load %arg3[%16, %c0_12, %c0_13] : memref<8x32x1xf32, #tpu.memory_space<vmem>>, vector<1x32x1xf32>
      %18 = vector.shape_cast %17 : vector<1x32x1xf32> to vector<32x1xf32>
      %19 = vector.extract_strided_slice %13 {offsets = [0, 0], sizes = [32, 128], strides = [1, 1]} : vector<96x128xf32> to vector<32x128xf32>
      %20 = vector.extract_strided_slice %14 {offsets = [0, 0], sizes = [32, 128], strides = [1, 1]} : vector<64x128xf32> to vector<32x128xf32>
      %21 = arith.addf %19, %20 : vector<32x128xf32>
      %22 = vector.broadcast %18 : vector<32x1xf32> to vector<32x128xf32>
      %23 = arith.addf %21, %22 : vector<32x128xf32>
      %24 = math.tanh %23 : vector<32x128xf32>
      %25 = vector.broadcast %3 : vector<32x1xf32> to vector<32x128xf32>
      %26 = arith.mulf %24, %25 : vector<32x128xf32>
      %cst_14 = arith.constant dense<0.000000e+00> : vector<128xf32>
      %27 = vector.multi_reduction <add>, %26, %cst_14 [0] : vector<32x128xf32> to vector<128xf32>
      %28 = vector.shape_cast %27 : vector<128xf32> to vector<1x128xf32>
      %cst_15 = arith.constant dense<0xFF800000> : vector<1xf32>
      %29 = vector.multi_reduction <maximumf>, %28, %cst_15 [1] : vector<1x128xf32> to vector<1xf32>
      %30 = vector.shape_cast %29 : vector<1xf32> to vector<1x1xf32>
      %31 = vector.broadcast %30 : vector<1x1xf32> to vector<1x128xf32>
      %32 = arith.subf %28, %31 : vector<1x128xf32>
      %33 = math.exp %32 : vector<1x128xf32>
      %cst_16 = arith.constant dense<0.000000e+00> : vector<1xf32>
      %34 = vector.multi_reduction <add>, %33, %cst_16 [1] : vector<1x128xf32> to vector<1xf32>
      %35 = vector.shape_cast %34 : vector<1xf32> to vector<1x1xf32>
      %36 = tpu.reciprocal %35 {approx = true} : vector<1x1xf32> -> vector<1x1xf32>
      %37 = vector.broadcast %36 : vector<1x1xf32> to vector<1x128xf32>
      %38 = arith.mulf %33, %37 : vector<1x128xf32>
      %39 = vector.extract_strided_slice %13 {offsets = [64, 0], sizes = [32, 128], strides = [1, 1]} : vector<96x128xf32> to vector<32x128xf32>
      %40 = vector.broadcast %38 : vector<1x128xf32> to vector<32x128xf32>
      %41 = arith.mulf %39, %40 : vector<32x128xf32>
      %cst_17 = arith.constant dense<0.000000e+00> : vector<32xf32>
      %42 = vector.multi_reduction <add>, %41, %cst_17 [1] : vector<32x128xf32> to vector<32xf32>
      %43 = vector.shape_cast %42 : vector<32xf32> to vector<32x1xf32>
      %44 = vector.extract_strided_slice %13 {offsets = [32, 0], sizes = [32, 128], strides = [1, 1]} : vector<96x128xf32> to vector<32x128xf32>
      %45 = vector.extract_strided_slice %14 {offsets = [32, 0], sizes = [32, 128], strides = [1, 1]} : vector<64x128xf32> to vector<32x128xf32>
      %46 = arith.addf %44, %45 : vector<32x128xf32>
      %47 = vector.broadcast %43 : vector<32x1xf32> to vector<32x128xf32>
      %48 = arith.addf %46, %47 : vector<32x128xf32>
      %49 = math.tanh %48 : vector<32x128xf32>
      %50 = vector.broadcast %4 : vector<32x1xf32> to vector<32x128xf32>
      %51 = arith.mulf %49, %50 : vector<32x128xf32>
      %cst_18 = arith.constant dense<0.000000e+00> : vector<128xf32>
      %52 = vector.multi_reduction <add>, %51, %cst_18 [0] : vector<32x128xf32> to vector<128xf32>
      %53 = vector.shape_cast %52 : vector<128xf32> to vector<1x128xf32>
      %54 = arith.index_cast %arg8 : i32 to index
      %c0_19 = arith.constant 0 : index
      %c0_20 = arith.constant 0 : index
      %55 = vector.load %arg7[%54, %c0_19, %c0_20] : memref<4x1x128xf32, #tpu.memory_space<vmem>>, vector<1x1x128xf32>
      %56 = vector.shape_cast %55 : vector<1x1x128xf32> to vector<1x128xf32>
      %57 = vector.shape_cast %53 : vector<1x128xf32> to vector<1x1x128xf32>
      tpu.vector_store %arg7[%54, %c0_19, %c0_20], %57 {strides = array<i32>} : memref<4x1x128xf32, #tpu.memory_space<vmem>>, vector<1x1x128xf32>,
    }
    %c4_i32_6 = arith.constant 4 : i32
    return
  }
  func.func @transform_0(%arg0: i32) -> (i32, i32, i32) {
    %c0_i32 = arith.constant 0 : i32
    %c0_i32_0 = arith.constant 0 : i32
    %c0_i32_1 = arith.constant 0 : i32
    return %arg0, %c0_i32, %c0_i32_0 : i32, i32, i32
  }
  func.func @transform_1(%arg0: i32) -> (i32, i32, i32) {
    %c0_i32 = arith.constant 0 : i32
    %c0_i32_0 = arith.constant 0 : i32
    %c0_i32_1 = arith.constant 0 : i32
    return %arg0, %c0_i32, %c0_i32_0 : i32, i32, i32
  }
  func.func @transform_2(%arg0: i32) -> (i32, i32, i32) {
    %c0_i32 = arith.constant 0 : i32
    %c0_i32_0 = arith.constant 0 : i32
    %c0_i32_1 = arith.constant 0 : i32
    %c0_i32_2 = arith.constant 0 : i32
    return %c0_i32, %c0_i32_0, %c0_i32_1 : i32, i32, i32
  }
  func.func @transform_3(%arg0: i32) -> (i32, i32) {
    %c0_i32 = arith.constant 0 : i32
    %c0_i32_0 = arith.constant 0 : i32
    %c0_i32_1 = arith.constant 0 : i32
    return %c0_i32, %c0_i32_0 : i32, i32
  }
  func.func @transform_4(%arg0: i32) -> (i32, i32) {
    %c0_i32 = arith.constant 0 : i32
    %c0_i32_0 = arith.constant 0 : i32
    %c0_i32_1 = arith.constant 0 : i32
    return %c0_i32, %c0_i32_0 : i32, i32
  }
  func.func @transform_5(%arg0: i32) -> (i32, i32) {
    %c0_i32 = arith.constant 0 : i32
    %c0_i32_0 = arith.constant 0 : i32
    %c0_i32_1 = arith.constant 0 : i32
    return %c0_i32, %c0_i32_0 : i32, i32
  }
  func.func @transform_6(%arg0: i32) -> (i32, i32, i32) {
    %c0_i32 = arith.constant 0 : i32
    %c0_i32_0 = arith.constant 0 : i32
    %c0_i32_1 = arith.constant 0 : i32
    return %arg0, %c0_i32, %c0_i32_0 : i32, i32, i32
  }
}

</mosaic_0001>

<llo_original>
// kernel: tpu_custom_call.1
$region0: #{tpu_custom_call.1}
  #allocation0 [shape = 'u32[]', space=smem, size = 0x4, offset = 0x4, fixed_abs, tag = 'smem constant byte address 0x4 - core index']
  #allocation1 [shape = 'u32[144,128]{1,0:T(1,128)}', space=vmem, size = 0x12000, scoped, tag = 'internal scratch']
  %s0 = inlined_call_operand.vmem [shape: f32[8,32,128], index: 0, kind: input, shape index: {}]
  %s1 = inlined_call_operand.vmem [shape: f32[8,32,128], index: 1, kind: input, shape index: {}]
  %s2 = inlined_call_operand.vmem [shape: f32[8,32,1], index: 2, kind: input, shape index: {}]
  %s3 = inlined_call_operand.vmem [shape: f32[96,32], index: 3, kind: input, shape index: {}]
  %s4 = inlined_call_operand.vmem [shape: f32[64,32], index: 4, kind: input, shape index: {}]
  %s5 = inlined_call_operand.vmem [shape: f32[32,2], index: 5, kind: input, shape index: {}]
  %s6 = inlined_call_operand.hbm [shape: f32[8,1,128], index: 6, kind: output, shape index: {}]
  %s7 = sld [smem:[#allocation0]]
  $region64: #{tpu_custom_call.1} parent=0
    _
  %s9 = ssub.s32 1, %s7
  %s10 = scalar_select 0, %s9, %s7
  $region1: #{tpu_custom_call.1} parent=0
    #allocation2 [shape = 'u8[4096]{0}', space=vmem, size = 0x1000, scoped, tag = 'output window, operand 0']
    #allocation3 [shape = 's32[2]{0}', space=sflag, size = 0x8, scoped, tag = 'scoped memory for tpu_custom_call.1']
    %11 = vsyncpa [#allocation3], 0
    %s12 = scalar_lea.sflag [#allocation3], 1
    %13 = vsyncpa %s12, 0
    loop: start=0, step=1, limit=4
    $region2: #{tpu_custom_call.1} parent=1 // loop_pre_header
      _
    $region3: #{tpu_custom_call.1} parent=1 // loop_header
      %s15 = sphi 0, %s19
      %p16 = scmp.ge.s32.totalorder %s15, 4
      %s25 = sphi 0, %s27
      %s28 = sphi 0, %s25
      %s29 = sphi 0, %s28
      %s45 = sphi 0, %s29
      %s51 = sphi 0, %s53
      %s54 = sphi 0, %s51
      %s55 = sphi 0, %s54
      %s71 = sphi 0, %s55
      %s75 = sphi 0, %s75
      %s77 = sphi 0, %s75
      %s78 = sphi 0, %s77
      %s92 = sphi 0, %s78
      %s96 = sphi 0, %s96
      %s98 = sphi 0, %s96
      %s99 = sphi 0, %s98
      %s113 = sphi 0, %s99
      %s117 = sphi 0, %s117
      %s119 = sphi 0, %s117
      %s120 = sphi 0, %s119
      %s134 = sphi 0, %s120
      %s138 = sphi 0, %s138
      %s140 = sphi 0, %s138
      %s141 = sphi 0, %s140
      %s155 = sphi 0, %s141
      %s161 = sphi 0, %s163
      %s164 = sphi 0, %s161
      %s165 = sphi 0, %s164
      %s181 = sphi 0, %s165
    $region4: #{tpu_custom_call.1} parent=1 // loop_header_branch
      %18 = sbr.rel (%p16) target = $region8
    $region5: #{tpu_custom_call.1} parent=1 // loop_body
      %s20 = ssub.s32 %s15, 1
      %s21 = ssub.s32 %s15, 2
      %s22 = sadd.s32 %s15, 1
      %s23 = ssub.s32 %s15, %s22
      %p24 = scmp.eq.s32.totalorder %s23, 0
      %s26 = sadd.s32 %s25, 1
      %s27 = scalar_select %p24, %s25, %s26
      %p30 = pneg %p24
      %p31 = scmp.eq.s32.totalorder %s15, 1
      %p32 = por %p30, %p31
      %p33 = scmp.ne.s32.totalorder %s25, %s28
      %p34 = scmp.eq.s32.totalorder %s15, 0
      %p35 = por %p33, %p34
      %p36 = scmp.ne.s32.totalorder %s25, %s28
      %p37 = scmp.eq.s32.totalorder %s20, 1
      %p38 = por %p36, %p37
      %p39 = scmp.ne.s32.totalorder %s28, %s29
      %p40 = scmp.eq.s32.totalorder %s20, 0
      %p41 = por %p39, %p40
      %p42 = scmp.ne.s32.totalorder %s28, %s29
      %p43 = scmp.eq.s32.totalorder %s21, 1
      %p44 = por %p42, %p43
      %p46 = scmp.ne.s32.totalorder %s29, %s45
      %p47 = scmp.eq.s32.totalorder %s21, 0
      %p48 = por %p46, %p47
      %s49 = ssub.s32 %s15, %s22
      %p50 = scmp.eq.s32.totalorder %s49, 0
      %s52 = sadd.s32 %s51, 1
      %s53 = scalar_select %p50, %s51, %s52
      %p56 = pneg %p50
      %p57 = scmp.eq.s32.totalorder %s15, 1
      %p58 = por %p56, %p57
      %p59 = scmp.ne.s32.totalorder %s51, %s54
      %p60 = scmp.eq.s32.totalorder %s15, 0
      %p61 = por %p59, %p60
      %p62 = scmp.ne.s32.totalorder %s51, %s54
      %p63 = scmp.eq.s32.totalorder %s20, 1
      %p64 = por %p62, %p63
      %p65 = scmp.ne.s32.totalorder %s54, %s55
      %p66 = scmp.eq.s32.totalorder %s20, 0
      %p67 = por %p65, %p66
      %p68 = scmp.ne.s32.totalorder %s54, %s55
      %p69 = scmp.eq.s32.totalorder %s21, 1
      %p70 = por %p68, %p69
      %p72 = scmp.ne.s32.totalorder %s55, %s71
      %p73 = scmp.eq.s32.totalorder %s21, 0
      %p74 = por %p72, %p73
      %s76 = sadd.s32 %s75, 1
      %p79 = scmp.eq.s32.totalorder %s15, 1
      %p80 = scmp.ne.s32.totalorder %s75, %s77
      %p81 = scmp.eq.s32.totalorder %s15, 0
      %p82 = por %p80, %p81
      %p83 = scmp.ne.s32.totalorder %s75, %s77
      %p84 = scmp.eq.s32.totalorder %s20, 1
      %p85 = por %p83, %p84
      %p86 = scmp.ne.s32.totalorder %s77, %s78
      %p87 = scmp.eq.s32.totalorder %s20, 0
      %p88 = por %p86, %p87
      %p89 = scmp.ne.s32.totalorder %s77, %s78
      %p90 = scmp.eq.s32.totalorder %s21, 1
      %p91 = por %p89, %p90
      %p93 = scmp.ne.s32.totalorder %s78, %s92
      %p94 = scmp.eq.s32.totalorder %s21, 0
      %p95 = por %p93, %p94
      %s97 = sadd.s32 %s96, 1
      %p100 = scmp.eq.s32.totalorder %s15, 1
      %p101 = scmp.ne.s32.totalorder %s96, %s98
      %p102 = scmp.eq.s32.totalorder %s15, 0
      %p103 = por %p101, %p102
      %p104 = scmp.ne.s32.totalorder %s96, %s98
      %p105 = scmp.eq.s32.totalorder %s20, 1
      %p106 = por %p104, %p105
      %p107 = scmp.ne.s32.totalorder %s98, %s99
      %p108 = scmp.eq.s32.totalorder %s20, 0
      %p109 = por %p107, %p108
      %p110 = scmp.ne.s32.totalorder %s98, %s99
      %p111 = scmp.eq.s32.totalorder %s21, 1
      %p112 = por %p110, %p111
      %p114 = scmp.ne.s32.totalorder %s99, %s113
      %p115 = scmp.eq.s32.totalorder %s21, 0
      %p116 = por %p114, %p115
      %s118 = sadd.s32 %s117, 1
      %p121 = scmp.eq.s32.totalorder %s15, 1
      %p122 = scmp.ne.s32.totalorder %s117, %s119
      %p123 = scmp.eq.s32.totalorder %s15, 0
      %p124 = por %p122, %p123
      %p125 = scmp.ne.s32.totalorder %s117, %s119
      %p126 = scmp.eq.s32.totalorder %s20, 1
      %p127 = por %p125, %p126
      %p128 = scmp.ne.s32.totalorder %s119, %s120
      %p129 = scmp.eq.s32.totalorder %s20, 0
      %p130 = por %p128, %p129
      %p131 = scmp.ne.s32.totalorder %s119, %s120
      %p132 = scmp.eq.s32.totalorder %s21, 1
      %p133 = por %p131, %p132
      %p135 = scmp.ne.s32.totalorder %s120, %s134
      %p136 = scmp.eq.s32.totalorder %s21, 0
      %p137 = por %p135, %p136
      %s139 = sadd.s32 %s138, 1
      %p142 = scmp.eq.s32.totalorder %s15, 1
      %p143 = scmp.ne.s32.totalorder %s138, %s140
      %p144 = scmp.eq.s32.totalorder %s15, 0
      %p145 = por %p143, %p144
      %p146 = scmp.ne.s32.totalorder %s138, %s140
      %p147 = scmp.eq.s32.totalorder %s20, 1
      %p148 = por %p146, %p147
      %p149 = scmp.ne.s32.totalorder %s140, %s141
      %p150 = scmp.eq.s32.totalorder %s20, 0
      %p151 = por %p149, %p150
      %p152 = scmp.ne.s32.totalorder %s140, %s141
      %p153 = scmp.eq.s32.totalorder %s21, 1
      %p154 = por %p152, %p153
      %p156 = scmp.ne.s32.totalorder %s141, %s155
      %p157 = scmp.eq.s32.totalorder %s21, 0
      %p158 = por %p156, %p157
      %s159 = ssub.s32 %s15, %s22
      %p160 = scmp.eq.s32.totalorder %s159, 0
      %s162 = sadd.s32 %s161, 1
      %s163 = scalar_select %p160, %s161, %s162
      %p166 = pneg %p160
      %p167 = scmp.eq.s32.totalorder %s15, 1
      %p168 = por %p166, %p167
      %p169 = scmp.ne.s32.totalorder %s161, %s164
      %p170 = scmp.eq.s32.totalorder %s15, 0
      %p171 = por %p169, %p170
      %p172 = scmp.ne.s32.totalorder %s161, %s164
      %p173 = scmp.eq.s32.totalorder %s20, 1
      %p174 = por %p172, %p173
      %p175 = scmp.ne.s32.totalorder %s164, %s165
      %p176 = scmp.eq.s32.totalorder %s20, 0
      %p177 = por %p175, %p176
      %p178 = scmp.ne.s32.totalorder %s164, %s165
      %p179 = scmp.eq.s32.totalorder %s21, 1
      %p180 = por %p178, %p179
      %p182 = scmp.ne.s32.totalorder %s165, %s181
      %p183 = scmp.eq.s32.totalorder %s21, 0
      %p184 = por %p182, %p183
      %p185 = scmp.le.s32.totalorder 1, %s15
      %p186 = scmp.lt.s32.totalorder %s15, 3
      %p187 = pnand %p185, %p186
      %p188 = pneg %p187
      // Predicated region
      $region9: #{tpu_custom_call.1} parent=5 // pred_check
        _
      $region10: #{tpu_custom_call.1} parent=5 // pred_check_branch
        %190 = sbr.rel (%p187) target = $region12
      $region11: #{tpu_custom_call.1} parent=5 // pred_region
        %s191 = ssub.s32 %s15, 1
        // Predicated region
        $region13: #{tpu_custom_call.1} parent=11 // pred_check
          %p192 = pneg %p88
        $region14: #{tpu_custom_call.1} parent=11 // pred_check_branch
          %194 = sbr.rel (%p192) target = $region16
        $region15: #{tpu_custom_call.1} parent=11 // pred_region
          _
        $region16: #{tpu_custom_call.1} parent=11 // pred_fallthru
          _
        // Predicated region
        $region17: #{tpu_custom_call.1} parent=11 // pred_check
          %p195 = pneg %p109
        $region18: #{tpu_custom_call.1} parent=11 // pred_check_branch
          %197 = sbr.rel (%p195) target = $region20
        $region19: #{tpu_custom_call.1} parent=11 // pred_region
          _
        $region20: #{tpu_custom_call.1} parent=11 // pred_fallthru
          _
        // Predicated region
        $region21: #{tpu_custom_call.1} parent=11 // pred_check
          %p198 = pneg %p130
        $region22: #{tpu_custom_call.1} parent=11 // pred_check_branch
          %200 = sbr.rel (%p198) target = $region24
        $region23: #{tpu_custom_call.1} parent=11 // pred_region
          _
        $region24: #{tpu_custom_call.1} parent=11 // pred_fallthru
          _
        // Predicated region
        $region25: #{tpu_custom_call.1} parent=11 // pred_check
          %p201 = pneg %p151
        $region26: #{tpu_custom_call.1} parent=11 // pred_check_branch
          %203 = sbr.rel (%p201) target = $region28
        $region27: #{tpu_custom_call.1} parent=11 // pred_region
          _
        $region28: #{tpu_custom_call.1} parent=11 // pred_fallthru
          _
      $region12: #{tpu_custom_call.1} parent=5 // pred_fallthru
        _
      %p204 = scmp.lt.s32.totalorder %s15, 2
      // Predicated region
      $region29: #{tpu_custom_call.1} parent=5 // pred_check
        %p205 = pneg %p204
      $region30: #{tpu_custom_call.1} parent=5 // pred_check_branch
        %207 = sbr.rel (%p205) target = $region32
      $region31: #{tpu_custom_call.1} parent=5 // pred_region
        // Predicated region
        $region33: #{tpu_custom_call.1} parent=31 // pred_check
          %p208 = pneg %p35
        $region34: #{tpu_custom_call.1} parent=31 // pred_check_branch
          %210 = sbr.rel (%p208) target = $region36
        $region35: #{tpu_custom_call.1} parent=31 // pred_region
          %s211 = smul.u32 4, %s15
          %p212 = scmp.lt.s32.totalorder %s211, 7
          %s213 = scalar_select %p212, %s211, 7
          %s214 = smul.addr %s213, 4
          %s215 = smul.addr %s214, 8
          %s216 = scalar_lea.vmem %s0, %s215
          %s217 = smul.u32 4, %s15
        $region36: #{tpu_custom_call.1} parent=31 // pred_fallthru
          _
        // Predicated region
        $region37: #{tpu_custom_call.1} parent=31 // pred_check
          %p218 = pneg %p61
        $region38: #{tpu_custom_call.1} parent=31 // pred_check_branch
          %220 = sbr.rel (%p218) target = $region40
        $region39: #{tpu_custom_call.1} parent=31 // pred_region
          %s221 = smul.u32 4, %s15
          %p222 = scmp.lt.s32.totalorder %s221, 7
          %s223 = scalar_select %p222, %s221, 7
          %s224 = smul.addr %s223, 4
          %s225 = smul.addr %s224, 8
          %s226 = scalar_lea.vmem %s1, %s225
          %s227 = smul.u32 4, %s15
        $region40: #{tpu_custom_call.1} parent=31 // pred_fallthru
          _
      $region32: #{tpu_custom_call.1} parent=5 // pred_fallthru
        _
      %p228 = scmp.le.s32.totalorder 1, %s15
      %p229 = scmp.lt.s32.totalorder %s15, 3
      %p230 = pnand %p228, %p229
      %p231 = pneg %p230
      // Predicated region
      $region41: #{tpu_custom_call.1} parent=5 // pred_check
        _
      $region42: #{tpu_custom_call.1} parent=5 // pred_check_branch
        %233 = sbr.rel (%p230) target = $region44
      $region43: #{tpu_custom_call.1} parent=5 // pred_region
        %s234 = ssub.s32 %s15, 1
        %s235 = smul.u32 4, %s20
        %p236 = scmp.lt.s32.totalorder %s235, 7
        %s237 = scalar_select %p236, %s235, 7
        %s238 = smul.addr %s237, 4
        %s239 = smul.addr %s238, 8
        %s240 = scalar_lea.vmem %s0, %s239
        %p241 = pneg %p41
        %p242 = pneg %p38
        %s243 = smul.u32 4, %s20
        %p244 = scmp.lt.s32.totalorder %s243, 7
        %s245 = scalar_select %p244, %s243, 7
        %s246 = smul.addr %s245, 4
        %s247 = smul.addr %s246, 8
        %s248 = scalar_lea.vmem %s1, %s247
        %p249 = pneg %p67
        %p250 = pneg %p64
        %p251 = pneg %p88
        %p252 = pneg %p85
        %p253 = pneg %p109
        %p254 = pneg %p106
        %p255 = pneg %p130
        %p256 = pneg %p127
        %p257 = pneg %p151
        %p258 = pneg %p148
        %p259 = pneg %p177
        %p260 = pneg %p174
        %s261 = sand.u32 %s164, 1
        %s262 = scalar_lea.sflag [#allocation3], %s261
        %s263 = sand.u32 %s164, 1
        %s264 = smul.addr %s263, 4
        %s265 = scalar_lea.vmem [#allocation2], %s264
        %s266 = smul.u32 4, %s20
        %p267 = scmp.lt.s32.totalorder %s266, 7
        %s268 = scalar_select %p267, %s266, 7
        %s269 = smul.addr %s268, 4
        %s270 = smul.addr %s269, 8
        %s271 = scalar_lea.vmem %s0, %s270
        %s272 = smul.u32 4, %s20
        %s273 = smul.u32 4, %s20
        %p274 = scmp.lt.s32.totalorder %s273, 7
        %s275 = scalar_select %p274, %s273, 7
        %s276 = smul.addr %s275, 4
        %s277 = smul.addr %s276, 8
        %s278 = scalar_lea.vmem %s1, %s277
        %s279 = smul.u32 4, %s20
        %s280 = smul.u32 4, %s20
        %v281 = vld [vmem:[%s3] sm:$0xff]
        %v282 = vld [vmem:[%s3 + $0x8] sm:$0xff]
        %v283 = vld [vmem:[%s3 + $0x10] sm:$0xff]
        %v284 = vld [vmem:[%s3 + $0x18] sm:$0xff]
        %v285 = vld [vmem:[%s3 + $0x20] sm:$0xff]
        %v286 = vld [vmem:[%s3 + $0x28] sm:$0xff]
        %v287 = vld [vmem:[%s3 + $0x30] sm:$0xff]
        %v288 = vld [vmem:[%s3 + $0x38] sm:$0xff]
        %v289 = vld [vmem:[%s3 + $0x40] sm:$0xff]
        %v290 = vld [vmem:[%s3 + $0x48] sm:$0xff]
        %v291 = vld [vmem:[%s3 + $0x50] sm:$0xff]
        %v292 = vld [vmem:[%s3 + $0x58] sm:$0xff]
        %v293 = vld [vmem:[%s4] sm:$0xff]
        %v294 = vld [vmem:[%s4 + $0x8] sm:$0xff]
        %v295 = vld [vmem:[%s4 + $0x10] sm:$0xff]
        %v296 = vld [vmem:[%s4 + $0x18] sm:$0xff]
        %v297 = vld [vmem:[%s4 + $0x20] sm:$0xff]
        %v298 = vld [vmem:[%s4 + $0x28] sm:$0xff]
        %v299 = vld [vmem:[%s4 + $0x30] sm:$0xff]
        %v300 = vld [vmem:[%s4 + $0x38] sm:$0xff]
        %v301 = vld [vmem:[%s5] sm:$0xff]
        %v302 = vld [vmem:[%s5 + $0x8] sm:$0xff]
        %v303 = vld [vmem:[%s5 + $0x10] sm:$0xff]
        %v304 = vld [vmem:[%s5 + $0x18] sm:$0xff]
        %s305 = smul.u32 %s20, 4
        loop: start=0, step=1, limit=4
        $region45: #{tpu_custom_call.1} parent=43 // loop_pre_header
          _
        $region46: #{tpu_custom_call.1} parent=43 // loop_header
          %s307 = sphi 0, %s311
          %p308 = scmp.ge.s32.totalorder %s307, 4
        $region47: #{tpu_custom_call.1} parent=43 // loop_header_branch
          %310 = sbr.rel (%p308) target = $region51
        $region48: #{tpu_custom_call.1} parent=43 // loop_body
          %s312 = smul.u32 %s307, 32
          %s313 = scalar_lea.vmem %s271, %s312
          %v314 = vld [vmem:[%s313] sm:$0xff]
          %v315 = vld [vmem:[%s313 + $0x8] sm:$0xff]
          %v316 = vld [vmem:[%s313 + $0x10] sm:$0xff]
          %v317 = vld [vmem:[%s313 + $0x18] sm:$0xff]
          %s318 = scalar_lea.vmem %s278, %s312
          %v319 = vld [vmem:[%s318] sm:$0xff]
          %v320 = vld [vmem:[%s318 + $0x8] sm:$0xff]
          %v321 = vld [vmem:[%s318 + $0x10] sm:$0xff]
          %v322 = vld [vmem:[%s318 + $0x18] sm:$0xff]
          %vm323 = vcmask 261120
          %v325 = vsel %vm323, %v281, 0
          %v328 = vsel %vm323, %v282, 0
          %v331 = vsel %vm323, %v283, 0
          %v334 = vsel %vm323, %v284, 0
          %v337 = vsel %vm323, %v285, 0
          %v340 = vsel %vm323, %v286, 0
          %v343 = vsel %vm323, %v287, 0
          %v346 = vsel %vm323, %v288, 0
          %v349 = vsel %vm323, %v289, 0
          %v352 = vsel %vm323, %v290, 0
          %v355 = vsel %vm323, %v291, 0
          %v358 = vsel %vm323, %v292, 0
          %360 = vmatprep.subr.mxu0 0.0
          %361 = vmatpush1.msra.mxu0 %v314
          %362 = vmatprep.subr.mxu0 0.0
          %363 = vmatpush1.msra.mxu0 %v315
          %364 = vmatprep.subr.mxu0 0.0
          %365 = vmatpush1.msra.mxu0 %v316
          %366 = vmatprep.subr.mxu0 0.0
          %367 = vmatpush1.msra.mxu0 %v317
          %368 = vmatprep.subr.mxu0 0.0
          %369 = vmatpush1.msra.mxu0 0.0
          %370 = vmatprep.subr.mxu0 0.0
          %371 = vmatpush1.msra.mxu0 0.0
          %372 = vmatprep.subr.mxu0 0.0
          %373 = vmatpush1.msra.mxu0 0.0
          %374 = vmatprep.subr.mxu0 0.0
          %375 = vmatpush1.msra.mxu0 0.0
          %376 = vmatprep.subr.mxu0 0.0
          %377 = vmatpush1.msra.mxu0 0.0
          %378 = vmatprep.subr.mxu0 0.0
          %379 = vmatpush1.msra.mxu0 0.0
          %380 = vmatprep.subr.mxu0 0.0
          %381 = vmatpush1.msra.mxu0 0.0
          %382 = vmatprep.subr.mxu0 0.0
          %383 = vmatpush1.msra.mxu0 0.0
          %384 = vmatprep.subr.mxu0 0.0
          %385 = vmatpush1.msra.mxu0 0.0
          %386 = vmatprep.subr.mxu0 0.0
          %387 = vmatpush1.msra.mxu0 0.0
          %388 = vmatprep.subr.mxu0 0.0
          %389 = vmatpush1.msra.mxu0 0.0
          %390 = vmatprep.subr.mxu0 0.0
          %391 = vmatpush1.msra.mxu0 0.0
          %392 = vmatprep.subr.mxu0 0.0
          %393 = vmatpush1.msra.mxu0 0.0
          %394 = vmatprep.subr.mxu0 0.0
          %395 = vmatpush1.msra.mxu0 0.0
          %396 = vmatprep.subr.mxu0 0.0
          %397 = vmatpush1.msra.mxu0 0.0
          %398 = vmatprep.subr.mxu0 0.0
          %399 = vmatpush1.msra.mxu0 0.0
          %400 = vmatprep.subr.mxu0 0.0
          %401 = vmatpush1.msra.mxu0 0.0
          %402 = vmatprep.subr.mxu0 0.0
          %403 = vmatpush1.msra.mxu0 0.0
          %404 = vmatprep.subr.mxu0 0.0
          %405 = vmatpush1.msra.mxu0 0.0
          %406 = vmatprep.subr.mxu0 0.0
          %407 = vmatpush1.msra.mxu0 0.0
          %408 = vmatprep.subr.mxu0 0.0
          %409 = vmatpush1.msra.mxu0 0.0
          %410 = vmatprep.subr.mxu0 0.0
          %411 = vmatpush1.msra.mxu0 0.0
          %412 = vmatprep.subr.mxu0 0.0
          %413 = vmatpush1.msra.mxu0 0.0
          %414 = vmatprep.subr.mxu0 0.0
          %415 = vmatpush1.msra.mxu0 0.0
          %416 = vmatprep.subr.mxu0 0.0
          %417 = vmatpush1.msra.mxu0 0.0
          %418 = vmatprep.subr.mxu0 0.0
          %419 = vmatpush1.msra.mxu0 0.0
          %420 = vmatprep.subr.mxu0 0.0
          %421 = vmatpush1.msra.mxu0 0.0
          %422 = vmatprep.subr.mxu0 0.0
          %423 = vmatpush1.msra.mxu0 0.0
          %424 = vmatprep.mubr.f32.mxu0 0.0
          %425 = vmatmul.mubr.f32.gmra.mrb[0].mxu0 %v325
          %v426 = vpop.f32.mrb[0].mxu0
          %v427 = vadd.f32 0.0, %v426
          %v428 = vpop.f32.mrb[0].mxu0
          %429 = vmatprep.mubr.f32.mxu0 0.0
          %430 = vmatmul.mubr.f32.gmra.mrb[0].mxu0 %v328
          %v431 = vpop.f32.mrb[0].mxu0
          %v432 = vadd.f32 0.0, %v431
          %v433 = vpop.f32.mrb[0].mxu0
          %434 = vmatprep.mubr.f32.mxu0 0.0
          %435 = vmatmul.mubr.f32.gmra.mrb[0].mxu0 %v331
          %v436 = vpop.f32.mrb[0].mxu0
          %v437 = vadd.f32 0.0, %v436
          %v438 = vpop.f32.mrb[0].mxu0
          %439 = vmatprep.mubr.f32.mxu0 0.0
          %440 = vmatmul.mubr.f32.gmra.mrb[0].mxu0 %v334
          %v441 = vpop.f32.mrb[0].mxu0
          %v442 = vadd.f32 0.0, %v441
          %v443 = vpop.f32.mrb[0].mxu0
          %444 = vmatprep.mubr.f32.mxu0 0.0
          %445 = vmatmul.mubr.f32.gmra.mrb[0].mxu0 %v337
          %v446 = vpop.f32.mrb[0].mxu0
          %v447 = vadd.f32 0.0, %v446
          %v448 = vpop.f32.mrb[0].mxu0
          %449 = vmatprep.mubr.f32.mxu0 0.0
          %450 = vmatmul.mubr.f32.gmra.mrb[0].mxu0 %v340
          %v451 = vpop.f32.mrb[0].mxu0
          %v452 = vadd.f32 0.0, %v451
          %v453 = vpop.f32.mrb[0].mxu0
          %454 = vmatprep.mubr.f32.mxu0 0.0
          %455 = vmatmul.mubr.f32.gmra.mrb[0].mxu0 %v343
          %v456 = vpop.f32.mrb[0].mxu0
          %v457 = vadd.f32 0.0, %v456
          %v458 = vpop.f32.mrb[0].mxu0
          %459 = vmatprep.mubr.f32.mxu0 0.0
          %460 = vmatmul.mubr.f32.gmra.mrb[0].mxu0 %v346
          %v461 = vpop.f32.mrb[0].mxu0
          %v462 = vadd.f32 0.0, %v461
          %v463 = vpop.f32.mrb[0].mxu0
          %464 = vmatprep.mubr.f32.mxu0 0.0
          %465 = vmatmul.mubr.f32.gmra.mrb[0].mxu0 %v349
          %v466 = vpop.f32.mrb[0].mxu0
          %v467 = vadd.f32 0.0, %v466
          %v468 = vpop.f32.mrb[0].mxu0
          %469 = vmatprep.mubr.f32.mxu0 0.0
          %470 = vmatmul.mubr.f32.gmra.mrb[0].mxu0 %v352
          %v471 = vpop.f32.mrb[0].mxu0
          %v472 = vadd.f32 0.0, %v471
          %v473 = vpop.f32.mrb[0].mxu0
          %474 = vmatprep.mubr.f32.mxu0 0.0
          %475 = vmatmul.mubr.f32.gmra.mrb[0].mxu0 %v355
          %v476 = vpop.f32.mrb[0].mxu0
          %v477 = vadd.f32 0.0, %v476
          %v478 = vpop.f32.mrb[0].mxu0
          %479 = vmatprep.mubr.f32.mxu0 0.0
          %480 = vmatmul.mubr.f32.gmra.mrb[0].mxu0 %v358
          %v481 = vpop.f32.mrb[0].mxu0
          %v482 = vadd.f32 0.0, %v481
          %v483 = vpop.f32.mrb[0].mxu0
          %484 = vdwg.mxu0
          %v486 = vsel %vm323, %v293, 0
          %v489 = vsel %vm323, %v294, 0
          %v492 = vsel %vm323, %v295, 0
          %v495 = vsel %vm323, %v296, 0
          %v498 = vsel %vm323, %v297, 0
          %v501 = vsel %vm323, %v298, 0
          %v504 = vsel %vm323, %v299, 0
          %v507 = vsel %vm323, %v300, 0
          %509 = vmatprep.subr.mxu0 0.0
          %510 = vmatpush1.msra.mxu0 %v319
          %511 = vmatprep.subr.mxu0 0.0
          %512 = vmatpush1.msra.mxu0 %v320
          %513 = vmatprep.subr.mxu0 0.0
          %514 = vmatpush1.msra.mxu0 %v321
          %515 = vmatprep.subr.mxu0 0.0
          %516 = vmatpush1.msra.mxu0 %v322
          %517 = vmatprep.subr.mxu0 0.0
          %518 = vmatpush1.msra.mxu0 0.0
          %519 = vmatprep.subr.mxu0 0.0
          %520 = vmatpush1.msra.mxu0 0.0
          %521 = vmatprep.subr.mxu0 0.0
          %522 = vmatpush1.msra.mxu0 0.0
          %523 = vmatprep.subr.mxu0 0.0
          %524 = vmatpush1.msra.mxu0 0.0
          %525 = vmatprep.subr.mxu0 0.0
          %526 = vmatpush1.msra.mxu0 0.0
          %527 = vmatprep.subr.mxu0 0.0
          %528 = vmatpush1.msra.mxu0 0.0
          %529 = vmatprep.subr.mxu0 0.0
          %530 = vmatpush1.msra.mxu0 0.0
          %531 = vmatprep.subr.mxu0 0.0
          %532 = vmatpush1.msra.mxu0 0.0
          %533 = vmatprep.subr.mxu0 0.0
          %534 = vmatpush1.msra.mxu0 0.0
          %535 = vmatprep.subr.mxu0 0.0
          %536 = vmatpush1.msra.mxu0 0.0
          %537 = vmatprep.subr.mxu0 0.0
          %538 = vmatpush1.msra.mxu0 0.0
          %539 = vmatprep.subr.mxu0 0.0
          %540 = vmatpush1.msra.mxu0 0.0
          %541 = vmatprep.subr.mxu0 0.0
          %542 = vmatpush1.msra.mxu0 0.0
          %543 = vmatprep.subr.mxu0 0.0
          %544 = vmatpush1.msra.mxu0 0.0
          %545 = vmatprep.subr.mxu0 0.0
          %546 = vmatpush1.msra.mxu0 0.0
          %547 = vmatprep.subr.mxu0 0.0
          %548 = vmatpush1.msra.mxu0 0.0
          %549 = vmatprep.subr.mxu0 0.0
          %550 = vmatpush1.msra.mxu0 0.0
          %551 = vmatprep.subr.mxu0 0.0
          %552 = vmatpush1.msra.mxu0 0.0
          %553 = vmatprep.subr.mxu0 0.0
          %554 = vmatpush1.msra.mxu0 0.0
          %555 = vmatprep.subr.mxu0 0.0
          %556 = vmatpush1.msra.mxu0 0.0
          %557 = vmatprep.subr.mxu0 0.0
          %558 = vmatpush1.msra.mxu0 0.0
          %559 = vmatprep.subr.mxu0 0.0
          %560 = vmatpush1.msra.mxu0 0.0
          %561 = vmatprep.subr.mxu0 0.0
          %562 = vmatpush1.msra.mxu0 0.0
          %563 = vmatprep.subr.mxu0 0.0
          %564 = vmatpush1.msra.mxu0 0.0
          %565 = vmatprep.subr.mxu0 0.0
          %566 = vmatpush1.msra.mxu0 0.0
          %567 = vmatprep.subr.mxu0 0.0
          %568 = vmatpush1.msra.mxu0 0.0
          %569 = vmatprep.subr.mxu0 0.0
          %570 = vmatpush1.msra.mxu0 0.0
          %571 = vmatprep.subr.mxu0 0.0
          %572 = vmatpush1.msra.mxu0 0.0
          %573 = vmatprep.mubr.f32.mxu0 0.0
          %574 = vmatmul.mubr.f32.gmra.mrb[0].mxu0 %v486
          %v575 = vpop.f32.mrb[0].mxu0
          %v576 = vadd.f32 0.0, %v575
          %v577 = vpop.f32.mrb[0].mxu0
          %578 = vmatprep.mubr.f32.mxu0 0.0
          %579 = vmatmul.mubr.f32.gmra.mrb[0].mxu0 %v489
          %v580 = vpop.f32.mrb[0].mxu0
          %v581 = vadd.f32 0.0, %v580
          %v582 = vpop.f32.mrb[0].mxu0
          %583 = vmatprep.mubr.f32.mxu0 0.0
          %584 = vmatmul.mubr.f32.gmra.mrb[0].mxu0 %v492
          %v585 = vpop.f32.mrb[0].mxu0
          %v586 = vadd.f32 0.0, %v585
          %v587 = vpop.f32.mrb[0].mxu0
          %588 = vmatprep.mubr.f32.mxu0 0.0
          %589 = vmatmul.mubr.f32.gmra.mrb[0].mxu0 %v495
          %v590 = vpop.f32.mrb[0].mxu0
          %v591 = vadd.f32 0.0, %v590
          %v592 = vpop.f32.mrb[0].mxu0
          %593 = vmatprep.mubr.f32.mxu0 0.0
          %594 = vmatmul.mubr.f32.gmra.mrb[0].mxu0 %v498
          %v595 = vpop.f32.mrb[0].mxu0
          %v596 = vadd.f32 0.0, %v595
          %v597 = vpop.f32.mrb[0].mxu0
          %598 = vmatprep.mubr.f32.mxu0 0.0
          %599 = vmatmul.mubr.f32.gmra.mrb[0].mxu0 %v501
          %v600 = vpop.f32.mrb[0].mxu0
          %v601 = vadd.f32 0.0, %v600
          %v602 = vpop.f32.mrb[0].mxu0
          %603 = vmatprep.mubr.f32.mxu0 0.0
          %604 = vmatmul.mubr.f32.gmra.mrb[0].mxu0 %v504
          %v605 = vpop.f32.mrb[0].mxu0
          %v606 = vadd.f32 0.0, %v605
          %v607 = vpop.f32.mrb[0].mxu0
          %608 = vmatprep.mubr.f32.mxu0 0.0
          %609 = vmatmul.mubr.f32.gmra.mrb[0].mxu0 %v507
          %v610 = vpop.f32.mrb[0].mxu0
          %v611 = vadd.f32 0.0, %v610
          %v612 = vpop.f32.mrb[0].mxu0
          %613 = vdwg.mxu0
          %s614 = sadd.s32 %s305, %s307
          %s615 = smul.u32 %s614, 32
          %s616 = scalar_lea.vmem %s2, %s615
          %v617 = vld [vmem:[%s616] sm:$0xff]
          %v618 = vld [vmem:[%s616 + $0x8] sm:$0xff]
          %v619 = vld [vmem:[%s616 + $0x10] sm:$0xff]
          %v620 = vld [vmem:[%s616 + $0x18] sm:$0xff]
          %v621 = vadd.f32 %v427, %v576
          %v622 = vadd.f32 %v432, %v581
          %v623 = vadd.f32 %v437, %v586
          %v624 = vadd.f32 %v442, %v591
          %626 = vset.pattern.permute.xlu0 0
          %627 = vperm.xlu0 %626, %v617
          %v628 = vpop.permute.xlu0 %627
          %631 = vset.pattern.permute.xlu0 0
          %632 = vperm.xlu0 %631, %v618
          %v633 = vpop.permute.xlu0 %632
          %636 = vset.pattern.permute.xlu0 0
          %637 = vperm.xlu0 %636, %v619
          %v638 = vpop.permute.xlu0 %637
          %641 = vset.pattern.permute.xlu0 0
          %642 = vperm.xlu0 %641, %v620
          %v643 = vpop.permute.xlu0 %642
          %v645 = vadd.f32 %v621, %v628
          %v646 = vadd.f32 %v622, %v633
          %v647 = vadd.f32 %v623, %v638
          %v648 = vadd.f32 %v624, %v643
          %v649 = vtanh.pop %v645
          %v650 = vtanh.pop %v646
          %v651 = vtanh.pop %v647
          %v652 = vtanh.pop %v648
          %654 = vset.pattern.permute.xlu0 0
          %655 = vperm.xlu0 %654, %v301
          %v656 = vpop.permute.xlu0 %655
          %659 = vset.pattern.permute.xlu0 0
          %660 = vperm.xlu0 %659, %v302
          %v661 = vpop.permute.xlu0 %660
          %664 = vset.pattern.permute.xlu0 0
          %665 = vperm.xlu0 %664, %v303
          %v666 = vpop.permute.xlu0 %665
          %669 = vset.pattern.permute.xlu0 0
          %670 = vperm.xlu0 %669, %v304
          %v671 = vpop.permute.xlu0 %670
          %v673 = vmul.f32 %v649, %v656
          %v674 = vmul.f32 %v650, %v661
          %v675 = vmul.f32 %v651, %v666
          %v676 = vmul.f32 %v652, %v671
          %v677 = vadd.f32 %v673, %v674
          %v678 = vadd.f32 %v677, %v675
          %v679 = vadd.f32 %v678, %v676
          %v680 = vrot.slane %v679, 4
          %v681 = vadd.f32 %v679, %v680
          %v682 = vrot.slane %v681, 2
          %v683 = vadd.f32 %v681, %v682
          %v684 = vrot.slane %v683, 1
          %v685 = vadd.f32 %v683, %v684
          %686 = vmax.xlane.f32.xlu0 %v685
          %v687 = vpop.xlane.xlu0 %686
          %v688 = vsub.f32 %v685, %v687
          %v689 = vmul.f32 %v688, 1.442695
          %v690 = vpow.pop %v689
          %691 = vadd.xlane.f32.xlu0 %v690
          %v692 = vpop.xlane.xlu0 %691
          %v693 = vrcp.pop %v692
          %v694 = vmul.f32 %v690, %v693
          %v695 = vmul.f32 %v467, %v694
          %v696 = vmul.f32 %v472, %v694
          %v697 = vmul.f32 %v477, %v694
          %v698 = vmul.f32 %v482, %v694
          %699 = vadd.xlane.f32.xlu0 %v695
          %v700 = vpop.xlane.xlu0 %699
          %701 = vadd.xlane.f32.xlu0 %v696
          %v702 = vpop.xlane.xlu0 %701
          %703 = vadd.xlane.f32.xlu0 %v697
          %v704 = vpop.xlane.xlu0 %703
          %705 = vadd.xlane.f32.xlu0 %v698
          %v706 = vpop.xlane.xlu0 %705
          %v707 = vadd.f32 %v447, %v596
          %v708 = vadd.f32 %v452, %v601
          %v709 = vadd.f32 %v457, %v606
          %v710 = vadd.f32 %v462, %v611
          %v711 = vadd.f32 %v707, %v700
          %v712 = vadd.f32 %v708, %v702
          %v713 = vadd.f32 %v709, %v704
          %v714 = vadd.f32 %v710, %v706
          %v715 = vtanh.pop %v711
          %v716 = vtanh.pop %v712
          %v717 = vtanh.pop %v713
          %v718 = vtanh.pop %v714
          %719 = vset.pattern.permute.xlu0 1
          %720 = vperm.xlu0 %719, %v301
          %v721 = vpop.permute.xlu0 %720
          %723 = vset.pattern.permute.xlu0 1
          %724 = vperm.xlu0 %723, %v302
          %v725 = vpop.permute.xlu0 %724
          %727 = vset.pattern.permute.xlu0 1
          %728 = vperm.xlu0 %727, %v303
          %v729 = vpop.permute.xlu0 %728
          %731 = vset.pattern.permute.xlu0 1
          %732 = vperm.xlu0 %731, %v304
          %v733 = vpop.permute.xlu0 %732
          %v735 = vmul.f32 %v715, %v721
          %v736 = vmul.f32 %v716, %v725
          %v737 = vmul.f32 %v717, %v729
          %v738 = vmul.f32 %v718, %v733
          %v739 = vadd.f32 %v735, %v736
          %v740 = vadd.f32 %v739, %v737
          %v741 = vadd.f32 %v740, %v738
          %v742 = vrot.slane %v741, 4
          %v743 = vadd.f32 %v741, %v742
          %v744 = vrot.slane %v743, 2
          %v745 = vadd.f32 %v743, %v744
          %v746 = vrot.slane %v745, 1
          %v747 = vadd.f32 %v745, %v746
          %s748 = scalar_lea.vmem %s265, %s307 [#allocation2]
          %749 = vst [vmem:[%s748] sm:$0x1] %v747
        $region49: #{tpu_custom_call.1} parent=43 // loop_footer
          %s311 = sadd.s32 1, %s307
        $region50: #{tpu_custom_call.1} parent=43 // loop_footer_branch
          %306 = sbr.rel target = $region46
        $region51: #{tpu_custom_call.1} parent=43 // loop_exit
          _
        %s750 = sand.u32 %s164, 1
        %s751 = scalar_lea.sflag [#allocation3], %s750
        %s752 = sand.u32 %s164, 1
        %s753 = smul.addr %s752, 4
        %s754 = scalar_lea.vmem [#allocation2], %s753
        // Predicated region
        $region52: #{tpu_custom_call.1} parent=43 // pred_check
          %p755 = pneg %p174
        $region53: #{tpu_custom_call.1} parent=43 // pred_check_branch
          %757 = sbr.rel (%p755) target = $region55
        $region54: #{tpu_custom_call.1} parent=43 // pred_region
          %s758 = smul.u32 4, %s20
          %s760 = ssub.s32 64, 64
          %761 = vsyncadd %s751, %s760
          %s762 = smul.addr %s758, 16
          %s763 = scalar_lea.hbm %s6, %s762
          %s764 = sshll.u32 %s754, 4
          %s765 = int_to_ptr.vmem [resolvable:$true] %s764
          %770 = dma.vmem_to_hbm [thread:$0]  %s765, 64, %s763, %s751, 16, 16, 1
        $region55: #{tpu_custom_call.1} parent=43 // pred_fallthru
          _
      $region44: #{tpu_custom_call.1} parent=5 // pred_fallthru
        _
      %p771 = scmp.le.s32.totalorder 2, %s15
      // Predicated region
      $region56: #{tpu_custom_call.1} parent=5 // pred_check
        %p772 = pneg %p771
      $region57: #{tpu_custom_call.1} parent=5 // pred_check_branch
        %774 = sbr.rel (%p772) target = $region59
      $region58: #{tpu_custom_call.1} parent=5 // pred_region
        %s775 = ssub.s32 %s15, 2
        // Predicated region
        $region60: #{tpu_custom_call.1} parent=58 // pred_check
          %p776 = pneg %p180
        $region61: #{tpu_custom_call.1} parent=58 // pred_check_branch
          %778 = sbr.rel (%p776) target = $region63
        $region62: #{tpu_custom_call.1} parent=58 // pred_region
          %s779 = sand.u32 %s165, 1
          %s780 = scalar_lea.sflag [#allocation3], %s779
          %s781 = sand.u32 %s165, 1
          %s782 = smul.addr %s781, 4
          %s783 = scalar_lea.vmem [#allocation2], %s782
          %784 = dma.done %s780, 64
        $region63: #{tpu_custom_call.1} parent=58 // pred_fallthru
          _
      $region59: #{tpu_custom_call.1} parent=5 // pred_fallthru
        _
    $region6: #{tpu_custom_call.1} parent=1 // loop_footer
      %s19 = sadd.s32 1, %s15
    $region7: #{tpu_custom_call.1} parent=1 // loop_footer_branch
      %14 = sbr.rel target = $region3
    $region8: #{tpu_custom_call.1} parent=1 // loop_exit
      _
    %785 = vsyncpa [#allocation3], 1
    %s786 = scalar_lea.sflag [#allocation3], 1
    %787 = vsyncpa %s786, 1

</llo_original>
